<compile_context>
chip_gen: v6e
topology: v6e:2x2x1
jax: 0.10.0
libtpu: 0.0.40
codegen_flags: <defaults>
</compile_context>

<pallas_src>
import functools

import jax
import jax.numpy as jnp
from jax.experimental import pallas as pl
from jax.experimental.pallas import tpu as pltpu

_LANE = 128   # lanes per vreg
_SUB = 8      # sublanes per vreg


def _round_up(x, m):
    return -(-x // m) * m


# ---------------------------------------------------------------------------
# Kernel building blocks
# ---------------------------------------------------------------------------
def _iou_loss_tile(pred_ref, tgt_ref, eps):
    """-log(IoU) for one (4, Tb, 128) coordinate-major tile -> (Tb, 128)."""
    px1 = pred_ref[0]
    py1 = pred_ref[1]
    px2 = pred_ref[2]
    py2 = pred_ref[3]
    tx1 = tgt_ref[0]
    ty1 = tgt_ref[1]
    tx2 = tgt_ref[2]
    ty2 = tgt_ref[3]

    # aligned bbox_overlaps (mmdet 2.x convention, no +1)
    iw = jnp.maximum(jnp.minimum(px2, tx2) - jnp.maximum(px1, tx1), 0.0)
    ih = jnp.maximum(jnp.minimum(py2, ty2) - jnp.maximum(py1, ty1), 0.0)
    overlap = iw * ih

    area_p = (px2 - px1) * (py2 - py1)
    area_t = (tx2 - tx1) * (ty2 - ty1)
    union = jnp.maximum(area_p + area_t - overlap, eps)

    # EUP reciprocal (exact) + VPU multiply; keep approx=False for accuracy.
    ious = jnp.maximum(overlap * pl.reciprocal(union, approx=False), eps)
    return -jnp.log(ious)


def _partial_sum_rows(loss):
    """(Tb, 128) -> (8, 128) partial sums via VPU adds on aligned vreg rows."""
    tb = loss.shape[0]
    acc = loss[0:_SUB, :]
    for r in range(_SUB, tb, _SUB):          # static unroll; tb is a constant
        acc = acc + loss[r:r + _SUB, :]
    return acc


def _pad_mask(tb, n):
    """(Tb, 128) f32 mask: 1.0 where the global box index < n, else 0.0."""
    row = jax.lax.broadcasted_iota(jnp.int32, (tb, _LANE), 0)
    lane = jax.lax.broadcasted_iota(jnp.int32, (tb, _LANE), 1)
    gidx = (pl.program_id(0) * tb + row) * _LANE + lane
    return (gidx < n).astype(jnp.float32)


# ---------------------------------------------------------------------------
# Kernels
# ---------------------------------------------------------------------------
def _sum_w_kernel(pred_ref, tgt_ref, w_ref, psum_ref, *, eps):
    # fused weight*mask stream zeroes the padded lanes
    loss = _iou_loss_tile(pred_ref, tgt_ref, eps) * w_ref[...]
    psum_ref[0] = _partial_sum_rows(loss)


def _sum_nw_kernel(pred_ref, tgt_ref, psum_ref, *, eps, n):
    tb = pred_ref.shape[1]
    loss = _iou_loss_tile(pred_ref, tgt_ref, eps) * _pad_mask(tb, n)
    psum_ref[0] = _partial_sum_rows(loss)


def _none_w_kernel(pred_ref, tgt_ref, w_ref, loss_ref, *, eps):
    loss_ref[...] = _iou_loss_tile(pred_ref, tgt_ref, eps) * w_ref[...]


def _none_nw_kernel(pred_ref, tgt_ref, loss_ref, *, eps):
    # Padded boxes produce -log(eps); the caller slices them off ([:n]).
    loss_ref[...] = _iou_loss_tile(pred_ref, tgt_ref, eps)


# ---------------------------------------------------------------------------
# pallas_call wrappers
# ---------------------------------------------------------------------------
def _box_spec(tb):
    return pl.BlockSpec((4, tb, _LANE), lambda i: (0, i, 0))


def _compiler_params(num_inputs):
    return pltpu.CompilerParams(
        dimension_semantics=("parallel",),
        allow_input_fusion=[True] * num_inputs)


def _run_sum(pred_t, tgt_t, w, tb, eps, n):
    nt_pad = pred_t.shape[1]
    grid = nt_pad // tb
    if w is None:
        kernel = functools.partial(_sum_nw_kernel, eps=eps, n=n)
        in_specs = [_box_spec(tb), _box_spec(tb)]
        args = (pred_t, tgt_t)
    else:
        kernel = functools.partial(_sum_w_kernel, eps=eps)
        in_specs = [_box_spec(tb), _box_spec(tb),
                    pl.BlockSpec((tb, _LANE), lambda i: (i, 0))]
        args = (pred_t, tgt_t, w)
    partials = pl.pallas_call(
        kernel,
        out_shape=jax.ShapeDtypeStruct((grid, _SUB, _LANE), jnp.float32),
        grid=(grid,),
        in_specs=in_specs,
        out_specs=pl.BlockSpec((1, _SUB, _LANE), lambda i: (i, 0, 0)),
        compiler_params=_compiler_params(len(in_specs)),
    )(*args)
    return jnp.sum(partials)        # dense final reduce (fused under jit)


def _run_none(pred_t, tgt_t, w, tb, eps):
    nt_pad = pred_t.shape[1]
    grid = nt_pad // tb
    if w is None:
        kernel = functools.partial(_none_nw_kernel, eps=eps)
        in_specs = [_box_spec(tb), _box_spec(tb)]
        args = (pred_t, tgt_t)
    else:
        kernel = functools.partial(_none_w_kernel, eps=eps)
        in_specs = [_box_spec(tb), _box_spec(tb),
                    pl.BlockSpec((tb, _LANE), lambda i: (i, 0))]
        args = (pred_t, tgt_t, w)
    return pl.pallas_call(
        kernel,
        out_shape=jax.ShapeDtypeStruct((nt_pad, _LANE), jnp.float32),
        grid=(grid,),
        in_specs=in_specs,
        out_specs=pl.BlockSpec((tb, _LANE), lambda i: (i, 0)),
        compiler_params=_compiler_params(len(in_specs)),
    )(*args)


def _choose_tiling(n, max_tile_rows):
    """Pick (nt_pad, tb): sublane rows of 128 boxes and rows per grid step."""
    nt = _round_up(n, _LANE) // _LANE          # 128-box sublane rows needed
    # Aim for >= 2 grid steps when there is enough work so the "parallel"
    # grid axis keeps both v7x TensorCores busy; harmless on v5e/v6e (1 TC).
    half_rows = _round_up(-(-nt // 2), _SUB)
    tb = min(max_tile_rows, max(_SUB, half_rows))
    nt_pad = _round_up(nt, tb)
    return nt_pad, tb


# ---------------------------------------------------------------------------
# Jitted forward (pad/transpose + kernel + reduce/scale all fused under jit)
# ---------------------------------------------------------------------------
@functools.partial(
    jax.jit,
    static_argnames=("n", "nt_pad", "tb", "eps", "mode", "loss_weight"))
def _iou_loss_forward(pred, target, weight, denom, *, n, nt_pad, tb, eps,
                      mode, loss_weight):
    np_total = nt_pad * _LANE
    pad_n = np_total - n

    predf = pred.astype(jnp.float32)
    tgtf = target.astype(jnp.float32)
    # One fused pad+transpose+reshape per box tensor; allow_input_fusion lets
    # the compiler fold it into the pallas_call input DMA where possible.
    # TODO(synk): accepting coordinate-major (4, n) boxes upstream would make
    # this prep a pure (free) reshape with zero extra HBM traffic.
    pred_t = jnp.pad(predf, ((0, pad_n), (0, 0))).T.reshape(4, nt_pad, _LANE)
    tgt_t = jnp.pad(tgtf, ((0, pad_n), (0, 0))).T.reshape(4, nt_pad, _LANE)

    if weight is None:
        w = None
    else:
        wf = weight.astype(jnp.float32)
        if wf.ndim > 1:                        # per-coordinate -> per-box
            wf = wf.mean(axis=-1)
        # padded boxes get weight 0.0 -> padding mask fused into the stream
        w = jnp.pad(wf.reshape(-1), (0, pad_n)).reshape(nt_pad, _LANE)

    if mode == "none":
        loss = _run_none(pred_t, tgt_t, w, tb, eps)
        return loss_weight * loss.reshape(-1)[:n]

    total = _run_sum(pred_t, tgt_t, w, tb, eps, n)
    if mode == "sum":
        return loss_weight * total
    return loss_weight * total / denom         # mode == "mean"


# ---------------------------------------------------------------------------
# Module
# ---------------------------------------------------------------------------
class IoULossPallas:
    """JAX/Pallas port of the PyTorch IoULoss module (forward pass only)."""

    def __init__(self, eps=1e-6, reduction="mean", loss_weight=1.0,
                 max_tile_rows=1024):
        # 1024 rows -> 1024*128 boxes per grid step: 2 MiB per bbox operand
        # block, ~9-10 MiB double-buffered. Fits v5e's 16 MiB scoped-VMEM
        # default and is far inside v6e (32/128 MiB) and v7x (32/64 MiB).
        assert max_tile_rows % _SUB == 0
        self.eps = float(eps)
        self.reduction = reduction
        self.loss_weight = float(loss_weight)
        self.max_tile_rows = int(max_tile_rows)

    def __call__(self, pred, target, weight=None, avg_factor=None,
                 reduction_override=None):
        assert reduction_override in (None, "none", "mean", "sum")

        # mmdet early return when every weight is zero.
        # TODO(synk): host-side branch on concrete values (one device sync);
        # the heavy path below is jitted. Hoist to the caller / lax.cond if
        # this forward must itself run under an outer jit.
        if weight is not None and not bool(jnp.any(weight > 0)):
            wf = weight.astype(jnp.float32)
            w_full = wf if wf.ndim > 1 else wf[:, None]
            return (pred.astype(jnp.float32) * w_full).sum()

        reduction = reduction_override if reduction_override else self.reduction
        n = pred.shape[0]
        nt_pad, tb = _choose_tiling(n, self.max_tile_rows)

        if reduction == "mean":
            # weight_reduce_loss: sum/avg_factor if given, else per-box mean.
            denom = avg_factor if avg_factor is not None else float(n)
        else:
            denom = None

        return _iou_loss_forward(
            pred, target, weight, denom,
            n=n, nt_pad=nt_pad, tb=tb, eps=self.eps, mode=reduction,
            loss_weight=self.loss_weight)


# ---------------------------------------------------------------------------
# Reference + test
# ---------------------------------------------------------------------------
def _reference_iou_loss(pred, target, weight, eps, reduction, loss_weight,
                        avg_factor=None):
    """Plain-JAX reference mirroring the torch semantics."""
    px1, py1, px2, py2 = [pred[:, i] for i in range(4)]
    tx1, ty1, tx2, ty2 = [target[:, i] for i in range(4)]
    iw = jnp.clip(jnp.minimum(px2, tx2) - jnp.maximum(px1, tx1), 0.0)
    ih = jnp.clip(jnp.minimum(py2, ty2) - jnp.maximum(py1, ty1), 0.0)
    overlap = iw * ih
    union = jnp.maximum((px2 - px1) * (py2 - py1) +
                        (tx2 - tx1) * (ty2 - ty1) - overlap, eps)
    ious = jnp.maximum(overlap / union, eps)
    loss = -jnp.log(ious)
    if weight is not None:
        loss = loss * weight
    if reduction == "mean":
        denom = avg_factor if avg_factor is not None else loss.shape[0]
        return loss_weight * loss.sum() / denom
    if reduction == "sum":
        return loss_weight * loss.sum()
    return loss_weight * loss


def _make_boxes(key, n):
    k1, k2, k3, k4 = jax.random.split(key, 4)
    xy = jax.random.uniform(k1, (n, 2), jnp.float32, 0.0, 10.0)
    wh = jax.random.uniform(k2, (n, 2), jnp.float32, 2.0, 6.0)
    pred = jnp.concatenate([xy, xy + wh], axis=1)                   # (n, 4)
    jitter = jax.random.uniform(k3, (n, 4), jnp.float32, -0.5, 0.5)
    target = pred + jitter                                          # overlaps pred
    weight = jax.random.uniform(k4, (n,), jnp.float32, 0.5, 1.5)
    return pred, target, weight


if __name__ == "__main__":
    key = jax.random.PRNGKey(0)
    k_small, k_big, k_pad, k_mid = jax.random.split(key, 4)

    loss_mod = IoULossPallas(eps=1e-6, reduction="mean", loss_weight=1.0)

    # ---- small: n = 8 boxes (single tile) ----
    n = 8
    pred, target, weight = _make_boxes(k_small, n)
    out_mean = jax.block_until_ready(loss_mod(pred, target, weight=weight))
    out_sum = jax.block_until_ready(
        loss_mod(pred, target, weight=weight, reduction_override="sum"))
    out_none = jax.block_until_ready(
        loss_mod(pred, target, reduction_override="none"))
    out_avgf = jax.block_until_ready(
        loss_mod(pred, target, weight=weight, avg_factor=5.0))

    ref_mean = _reference_iou_loss(pred, target, weight, 1e-6, "mean", 1.0)
    ref_sum = _reference_iou_loss(pred, target, weight, 1e-6, "sum", 1.0)
    ref_none = _reference_iou_loss(pred, target, None, 1e-6, "none", 1.0)
    ref_avgf = _reference_iou_loss(pred, target, weight, 1e-6, "mean", 1.0,
                                   avg_factor=5.0)
    assert jnp.allclose(out_mean, ref_mean, rtol=1e-5, atol=1e-5), (out_mean, ref_mean)
    assert jnp.allclose(out_sum, ref_sum, rtol=1e-5, atol=1e-5), (out_sum, ref_sum)
    assert jnp.allclose(out_none, ref_none, rtol=1e-5, atol=1e-5)
    assert jnp.allclose(out_avgf, ref_avgf, rtol=1e-5, atol=1e-5), (out_avgf, ref_avgf)

    # ---- padding correctness: n not a multiple of 128 (in-kernel iota mask) ----
    n_pad = 200
    pred_p, target_p, weight_p = _make_boxes(k_pad, n_pad)
    out_p_sum = jax.block_until_ready(
        loss_mod(pred_p, target_p, reduction_override="sum"))          # no weight
    out_p_mean_w = jax.block_until_ready(loss_mod(pred_p, target_p, weight=weight_p))
    ref_p_sum = _reference_iou_loss(pred_p, target_p, None, 1e-6, "sum", 1.0)
    ref_p_mean_w = _reference_iou_loss(pred_p, target_p, weight_p, 1e-6, "mean", 1.0)
    assert jnp.allclose(out_p_sum, ref_p_sum, rtol=1e-5, atol=1e-4), (out_p_sum, ref_p_sum)
    assert jnp.allclose(out_p_mean_w, ref_p_mean_w, rtol=1e-5, atol=1e-5)

    # ---- multi-tile grid path: n = 2048, tb = 8 -> grid of 2 steps ----
    n2 = 2048
    pred2, target2, weight2 = _make_boxes(k_big, n2)
    loss_mod_tiled = IoULossPallas(eps=1e-6, reduction="mean", loss_weight=1.0,
                                   max_tile_rows=8)
    out2_mean = jax.block_until_ready(
        loss_mod_tiled(pred2, target2, weight=weight2))
    out2_none = jax.block_until_ready(
        loss_mod_tiled(pred2, target2, weight=weight2, reduction_override="none"))
    ref2_mean = _reference_iou_loss(pred2, target2, weight2, 1e-6, "mean", 1.0)
    ref2_none = _reference_iou_loss(pred2, target2, weight2, 1e-6, "none", 1.0)
    assert jnp.allclose(out2_mean, ref2_mean, rtol=1e-5, atol=1e-5), (out2_mean, ref2_mean)
    assert jnp.allclose(out2_none, ref2_none, rtol=1e-5, atol=1e-5)

    # ---- larger tiles via the default auto-tiling: n = 20000 -> tb = 80, grid = 2 ----
    n3 = 20_000
    pred3, target3, weight3 = _make_boxes(k_mid, n3)
    out3_mean = jax.block_until_ready(loss_mod(pred3, target3, weight=weight3))
    out3_sum_nw = jax.block_until_ready(
        loss_mod(pred3, target3, reduction_override="sum"))
    ref3_mean = _reference_iou_loss(pred3, target3, weight3, 1e-6, "mean", 1.0)
    ref3_sum_nw = _reference_iou_loss(pred3, target3, None, 1e-6, "sum", 1.0)
    assert jnp.allclose(out3_mean, ref3_mean, rtol=1e-4, atol=1e-4), (out3_mean, ref3_mean)
    assert jnp.allclose(out3_sum_nw, ref3_sum_nw, rtol=1e-4, atol=1e-4), (out3_sum_nw, ref3_sum_nw)

    print("KERNEL_OK")
</pallas_src>

<mosaic_0001>
module attributes {stable_mosaic.version = 11 : i64} {
  func.func @_sum_w_kernel(%arg0: i32, %arg1: memref<4x8x128xf32, #tpu.memory_space<vmem>>, %arg2: memref<4x8x128xf32, #tpu.memory_space<vmem>>, %arg3: memref<8x128xf32, #tpu.memory_space<vmem>>, %arg4: memref<1x8x128xf32, #tpu.memory_space<vmem>>) attributes {dimension_semantics = [#tpu.dimension_semantics<parallel>], iteration_bounds = array<i64: 1>, scalar_prefetch = 0 : i64, scratch_operands = 0 : i64, tpu.core_type = #tpu.core_type<tc>, window_params = [{transform_indices = @transform_0, window_bounds = array<i64: 4, 8, 128>}, {transform_indices = @transform_1, window_bounds = array<i64: 4, 8, 128>}, {transform_indices = @transform_2, window_bounds = array<i64: 8, 128>}, {transform_indices = @transform_3, window_bounds = array<i64: 1, 8, 128>}]} {
    %c0 = arith.constant 0 : index
    %c0_0 = arith.constant 0 : index
    %c0_1 = arith.constant 0 : index
    %0 = vector.load %arg1[%c0, %c0_0, %c0_1] : memref<4x8x128xf32, #tpu.memory_space<vmem>>, vector<1x8x128xf32>
    %1 = vector.shape_cast %0 : vector<1x8x128xf32> to vector<8x128xf32>
    %c1 = arith.constant 1 : index
    %c0_2 = arith.constant 0 : index
    %c0_3 = arith.constant 0 : index
    %2 = vector.load %arg1[%c1, %c0_2, %c0_3] : memref<4x8x128xf32, #tpu.memory_space<vmem>>, vector<1x8x128xf32>
    %3 = vector.shape_cast %2 : vector<1x8x128xf32> to vector<8x128xf32>
    %c2 = arith.constant 2 : index
    %c0_4 = arith.constant 0 : index
    %c0_5 = arith.constant 0 : index
    %4 = vector.load %arg1[%c2, %c0_4, %c0_5] : memref<4x8x128xf32, #tpu.memory_space<vmem>>, vector<1x8x128xf32>
    %5 = vector.shape_cast %4 : vector<1x8x128xf32> to vector<8x128xf32>
    %c3 = arith.constant 3 : index
    %c0_6 = arith.constant 0 : index
    %c0_7 = arith.constant 0 : index
    %6 = vector.load %arg1[%c3, %c0_6, %c0_7] : memref<4x8x128xf32, #tpu.memory_space<vmem>>, vector<1x8x128xf32>
    %7 = vector.shape_cast %6 : vector<1x8x128xf32> to vector<8x128xf32>
    %c0_8 = arith.constant 0 : index
    %c0_9 = arith.constant 0 : index
    %c0_10 = arith.constant 0 : index
    %8 = vector.load %arg2[%c0_8, %c0_9, %c0_10] : memref<4x8x128xf32, #tpu.memory_space<vmem>>, vector<1x8x128xf32>
    %9 = vector.shape_cast %8 : vector<1x8x128xf32> to vector<8x128xf32>
    %c1_11 = arith.constant 1 : index
    %c0_12 = arith.constant 0 : index
    %c0_13 = arith.constant 0 : index
    %10 = vector.load %arg2[%c1_11, %c0_12, %c0_13] : memref<4x8x128xf32, #tpu.memory_space<vmem>>, vector<1x8x128xf32>
    %11 = vector.shape_cast %10 : vector<1x8x128xf32> to vector<8x128xf32>
    %c2_14 = arith.constant 2 : index
    %c0_15 = arith.constant 0 : index
    %c0_16 = arith.constant 0 : index
    %12 = vector.load %arg2[%c2_14, %c0_15, %c0_16] : memref<4x8x128xf32, #tpu.memory_space<vmem>>, vector<1x8x128xf32>
    %13 = vector.shape_cast %12 : vector<1x8x128xf32> to vector<8x128xf32>
    %c3_17 = arith.constant 3 : index
    %c0_18 = arith.constant 0 : index
    %c0_19 = arith.constant 0 : index
    %14 = vector.load %arg2[%c3_17, %c0_18, %c0_19] : memref<4x8x128xf32, #tpu.memory_space<vmem>>, vector<1x8x128xf32>
    %15 = vector.shape_cast %14 : vector<1x8x128xf32> to vector<8x128xf32>
    %16 = arith.minimumf %5, %13 : vector<8x128xf32>
    %17 = arith.maximumf %1, %9 : vector<8x128xf32>
    %18 = arith.subf %16, %17 : vector<8x128xf32>
    %cst = arith.constant 0.000000e+00 : f32
    %19 = vector.broadcast %cst : f32 to vector<8x128xf32>
    %20 = arith.maximumf %18, %19 : vector<8x128xf32>
    %21 = arith.minimumf %7, %15 : vector<8x128xf32>
    %22 = arith.maximumf %3, %11 : vector<8x128xf32>
    %23 = arith.subf %21, %22 : vector<8x128xf32>
    %cst_20 = arith.constant 0.000000e+00 : f32
    %24 = vector.broadcast %cst_20 : f32 to vector<8x128xf32>
    %25 = arith.maximumf %23, %24 : vector<8x128xf32>
    %26 = arith.mulf %20, %25 : vector<8x128xf32>
    %27 = arith.subf %5, %1 : vector<8x128xf32>
    %28 = arith.subf %7, %3 : vector<8x128xf32>
    %29 = arith.mulf %27, %28 : vector<8x128xf32>
    %30 = arith.subf %13, %9 : vector<8x128xf32>
    %31 = arith.subf %15, %11 : vector<8x128xf32>
    %32 = arith.mulf %30, %31 : vector<8x128xf32>
    %33 = arith.addf %29, %32 : vector<8x128xf32>
    %34 = arith.subf %33, %26 : vector<8x128xf32>
    %cst_21 = arith.constant 9.99999997E-7 : f32
    %35 = vector.broadcast %cst_21 : f32 to vector<8x128xf32>
    %36 = arith.maximumf %34, %35 : vector<8x128xf32>
    %37 = tpu.reciprocal %36 : vector<8x128xf32> -> vector<8x128xf32>
    %38 = arith.mulf %26, %37 : vector<8x128xf32>
    %cst_22 = arith.constant 9.99999997E-7 : f32
    %39 = vector.broadcast %cst_22 : f32 to vector<8x128xf32>
    %40 = arith.maximumf %38, %39 : vector<8x128xf32>
    %41 = math.log %40 : vector<8x128xf32>
    %cst_23 = arith.constant 0.000000e+00 : f32
    %42 = vector.broadcast %cst_23 : f32 to vector<8x128xf32>
    %43 = arith.subf %42, %41 : vector<8x128xf32>
    %c0_24 = arith.constant 0 : index
    %c0_25 = arith.constant 0 : index
    %44 = vector.load %arg3[%c0_24, %c0_25] : memref<8x128xf32, #tpu.memory_space<vmem>>, vector<8x128xf32>
    %45 = arith.mulf %43, %44 : vector<8x128xf32>
    %c0_26 = arith.constant 0 : index
    %c0_27 = arith.constant 0 : index
    %c0_28 = arith.constant 0 : index
    %46 = vector.load %arg4[%c0_26, %c0_27, %c0_28] : memref<1x8x128xf32, #tpu.memory_space<vmem>>, vector<1x8x128xf32>
    %47 = vector.shape_cast %46 : vector<1x8x128xf32> to vector<8x128xf32>
    %48 = vector.shape_cast %45 : vector<8x128xf32> to vector<1x8x128xf32>
    tpu.vector_store %arg4[%c0_26, %c0_27, %c0_28], %48 {strides = array<i32>} : memref<1x8x128xf32, #tpu.memory_space<vmem>>, vector<1x8x128xf32>,
    return
  }
  func.func @transform_0(%arg0: i32) -> (i32, i32, i32) {
    %c0_i32 = arith.constant 0 : i32
    %c0_i32_0 = arith.constant 0 : i32
    %c0_i32_1 = arith.constant 0 : i32
    return %c0_i32, %arg0, %c0_i32_0 : i32, i32, i32
  }
  func.func @transform_1(%arg0: i32) -> (i32, i32, i32) {
    %c0_i32 = arith.constant 0 : i32
    %c0_i32_0 = arith.constant 0 : i32
    %c0_i32_1 = arith.constant 0 : i32
    return %c0_i32, %arg0, %c0_i32_0 : i32, i32, i32
  }
  func.func @transform_2(%arg0: i32) -> (i32, i32) {
    %c0_i32 = arith.constant 0 : i32
    %c0_i32_0 = arith.constant 0 : i32
    return %arg0, %c0_i32 : i32, i32
  }
  func.func @transform_3(%arg0: i32) -> (i32, i32, i32) {
    %c0_i32 = arith.constant 0 : i32
    %c0_i32_0 = arith.constant 0 : i32
    %c0_i32_1 = arith.constant 0 : i32
    return %arg0, %c0_i32, %c0_i32_0 : i32, i32, i32
  }
}

</mosaic_0001>

<llo_original>
// kernel: _iou_loss_forward.2
$region0: #{_iou_loss_forward.2}
  #allocation0 [shape = 'u32[]', space=smem, size = 0x4, offset = 0x4, fixed_abs, tag = 'smem constant byte address 0x4 - core index']
  #allocation1 [shape = 'u32[144,128]{1,0:T(1,128)}', space=vmem, size = 0x12000, scoped, tag = 'internal scratch']
  #allocation2 [shape = 'u32[2048]{0}', space=vmem, size = 0x2000, scoped, tag = 'scoped memory for _iou_loss_forward.2']
  #allocation3 [shape = 'u32[2048]{0}', space=vmem, size = 0x2000, scoped, tag = 'scoped memory for _iou_loss_forward.2']
  #allocation4 [shape = 'u32[2048]{0}', space=vmem, size = 0x2000, scoped, tag = 'scoped memory for _iou_loss_forward.2']
  #allocation5 [shape = 'u32[2048]{0}', space=vmem, size = 0x2000, scoped, tag = 'scoped memory for _iou_loss_forward.2']
  #allocation6 [shape = 'u32[2048]{0}', space=vmem, size = 0x2000, scoped, tag = 'scoped memory for _iou_loss_forward.2']
  %s0 = inlined_call_operand.vmem [shape: f32[1,4,8,128], index: 0, kind: input, shape index: {}]
  %s1 = inlined_call_operand.vmem [shape: f32[1,4,8,128], index: 1, kind: input, shape index: {}]
  %s2 = inlined_call_operand.vmem [shape: f32[8], index: 2, kind: input, shape index: {}]
  %s3 = inlined_call_operand.<no memory space> [shape: f32[], index: 3, kind: input, shape index: {}]
  %s4 = inlined_call_operand.vmem [shape: f32[1,8,128], index: 4, kind: output, shape index: {}]
  %s5 = sld [smem:[#allocation0]]
  $region22: #{_iou_loss_forward.2} parent=0
    _
  %s7 = ssub.s32 1, %s5
  %s8 = scalar_select 0, %s7, %s5
  %v9 = vstv %s3
  $region1: #{_iou_loss_forward.2} parent=0
    #allocation7 [shape = 'u8[16384]{0}', space=vmem, size = 0x4000, dematerialized = true, scoped, tag = 'FusionAdapter Buffer %fusion.2 = f32[4,8,128]{2,1,0:T(8,128)} fusion(%param_1.5), kind=kLoop, calls=%fused_computation.2.clone, metadata={op_name="jit(_iou_loss_forward)/reshape" stack_frame_id=11}']
    #allocation8 [shape = 'u8[16384]{0}', space=vmem, size = 0x4000, dematerialized = true, scoped, tag = 'FusionAdapter Buffer %fusion.1 = f32[4,8,128]{2,1,0:T(8,128)} fusion(%param_0.8), kind=kLoop, calls=%fused_computation.1.clone, metadata={op_name="jit(_iou_loss_forward)/reshape" stack_frame_id=13}']
    #allocation9 [shape = 'u8[4096]{0}', space=vmem, size = 0x1000, dematerialized = true, scoped, tag = 'FusionAdapter Buffer %fusion.3 = f32[8,128]{1,0:T(8,128)} fusion(%param_2.4, %param_3), kind=kLoop, calls=%fused_computation.5.clone, metadata={op_name="jit(_iou_loss_forward)/reshape" stack_frame_id=15}']
    // Predicated region
    $region2: #{_iou_loss_forward.2} parent=1 // pred_check
      _
    $region3: #{_iou_loss_forward.2} parent=1 // pred_check_branch
      %11 = sbr.rel (0) target = $region5
    $region4: #{_iou_loss_forward.2} parent=1 // pred_region
      _
    $region5: #{_iou_loss_forward.2} parent=1 // pred_fallthru
      _
    // Predicated region
    $region6: #{_iou_loss_forward.2} parent=1 // pred_check
      _
    $region7: #{_iou_loss_forward.2} parent=1 // pred_check_branch
      %13 = sbr.rel (0) target = $region9
    $region8: #{_iou_loss_forward.2} parent=1 // pred_region
      _
    $region9: #{_iou_loss_forward.2} parent=1 // pred_fallthru
      _
    // Predicated region
    $region10: #{_iou_loss_forward.2} parent=1 // pred_check
      _
    $region11: #{_iou_loss_forward.2} parent=1 // pred_check_branch
      %15 = sbr.rel (0) target = $region13
    $region12: #{_iou_loss_forward.2} parent=1 // pred_region
      _
    $region13: #{_iou_loss_forward.2} parent=1 // pred_fallthru
      _
    %v16 = vld [vmem:[%s1] sm:$0xff]
    %s18 = ssub.s32 256, 1
    %19 = vst [vmem:[#allocation7] sm:%s18] %v16
    %s20 = scalar_lea.vmem %s1, 8
    %v21 = vld [vmem:[%s20] sm:$0xff]
    %s22 = scalar_lea.vmem [#allocation7], 8
    %s24 = ssub.s32 256, 1
    %25 = vst [vmem:[%s22] sm:%s24] %v21
    %s26 = scalar_lea.vmem %s1, 16
    %v27 = vld [vmem:[%s26] sm:$0xff]
    %s28 = scalar_lea.vmem [#allocation7], 16
    %s30 = ssub.s32 256, 1
    %31 = vst [vmem:[%s28] sm:%s30] %v27
    %s32 = scalar_lea.vmem %s1, 24
    %v33 = vld [vmem:[%s32] sm:$0xff]
    %s34 = scalar_lea.vmem [#allocation7], 24
    %s36 = ssub.s32 256, 1
    %37 = vst [vmem:[%s34] sm:%s36] %v33
    %v38 = vld [vmem:[%s0] sm:$0xff]
    %s40 = ssub.s32 256, 1
    %41 = vst [vmem:[#allocation8] sm:%s40] %v38
    %s42 = scalar_lea.vmem %s0, 8
    %v43 = vld [vmem:[%s42] sm:$0xff]
    %s44 = scalar_lea.vmem [#allocation8], 8
    %s46 = ssub.s32 256, 1
    %47 = vst [vmem:[%s44] sm:%s46] %v43
    %s48 = scalar_lea.vmem %s0, 16
    %v49 = vld [vmem:[%s48] sm:$0xff]
    %s50 = scalar_lea.vmem [#allocation8], 16
    %s52 = ssub.s32 256, 1
    %53 = vst [vmem:[%s50] sm:%s52] %v49
    %s54 = scalar_lea.vmem %s0, 24
    %v55 = vld [vmem:[%s54] sm:$0xff]
    %s56 = scalar_lea.vmem [#allocation8], 24
    %s58 = ssub.s32 256, 1
    %59 = vst [vmem:[%s56] sm:%s58] %v55
    %v60 = vld [vmem:[%s2] sm:$0x1]
    %v61 = vlaneseq
    %vm63 = vcmp.lt.s32.totalorder %v61, 8
    %v64 = vsel %vm63, %v60, %v9
    %s66 = ssub.s32 256, 1
    %67 = vst [vmem:[#allocation9] sm:%s66] %v64
    %v68 = vld [vmem:[#allocation7] sm:$0xff]
    %s69 = scalar_lea.vmem [#allocation7], 8
    %v70 = vld [vmem:[%s69] sm:$0xff]
    %s71 = scalar_lea.vmem [#allocation7], 16
    %v72 = vld [vmem:[%s71] sm:$0xff]
    %s73 = scalar_lea.vmem [#allocation7], 24
    %v74 = vld [vmem:[%s73] sm:$0xff]
    %v75 = vld [vmem:[#allocation8] sm:$0xff]
    %s76 = scalar_lea.vmem [#allocation8], 8
    %v77 = vld [vmem:[%s76] sm:$0xff]
    %s78 = scalar_lea.vmem [#allocation8], 16
    %v79 = vld [vmem:[%s78] sm:$0xff]
    %s80 = scalar_lea.vmem [#allocation8], 24
    %v81 = vld [vmem:[%s80] sm:$0xff]
    %v82 = vmin.f32 %v72, %v79
    %v83 = vmax.f32 %v68, %v75
    %v84 = vsub.f32 %v82, %v83
    %v85 = vmax.f32 %v84, 0.0
    %v86 = vmin.f32 %v74, %v81
    %v87 = vmax.f32 %v70, %v77
    %v88 = vsub.f32 %v86, %v87
    %v89 = vmax.f32 %v88, 0.0
    %v90 = vmul.f32 %v85, %v89
    %v91 = vsub.f32 %v72, %v68
    %v92 = vsub.f32 %v74, %v70
    %v93 = vmul.f32 %v91, %v92
    %v94 = vsub.f32 %v79, %v75
    %v95 = vsub.f32 %v81, %v77
    %v96 = vmul.f32 %v94, %v95
    %v97 = vadd.f32 %v93, %v96
    %v98 = vsub.f32 %v97, %v90
    %v99 = vmax.f32 %v98, 1e-06
    %v100 = vrcp.pop %v99
    %v101 = vmul.f32 %v90, %v100
    %v102 = vmax.f32 %v101, 1e-06
    %v103 = vlog2.pop %v102
    %v104 = vmul.f32 %v103, 0.6931472
    %v105 = vsub.f32 0.0, %v104
    %v106 = vld [vmem:[#allocation9] sm:$0xff]
    %v107 = vmul.f32 %v105, %v106
    %108 = vst [vmem:[%s4] sm:$0xff] %v107
    // Predicated region
    $region14: #{_iou_loss_forward.2} parent=1 // pred_check
      _
    $region15: #{_iou_loss_forward.2} parent=1 // pred_check_branch
      %110 = sbr.rel (0) target = $region17
    $region16: #{_iou_loss_forward.2} parent=1 // pred_region
      _
    $region17: #{_iou_loss_forward.2} parent=1 // pred_fallthru
      _
    // Predicated region
    $region18: #{_iou_loss_forward.2} parent=1 // pred_check
      _
    $region19: #{_iou_loss_forward.2} parent=1 // pred_check_branch
      %112 = sbr.rel (0) target = $region21
    $region20: #{_iou_loss_forward.2} parent=1 // pred_region
      _
    $region21: #{_iou_loss_forward.2} parent=1 // pred_fallthru
      _

</llo_original>
